<compile_context>
chip_gen: v7x
topology: tpu7x:2x2x1
jax: 0.10.0
libtpu: 0.0.40
codegen_flags: <defaults>
</compile_context>

<pallas_src>
import jax
import jax.numpy as jnp
import numpy as np
from jax.experimental import pallas as pl
from jax.experimental.pallas import tpu as pltpu

_MIB = 1 << 20


def _round_up(a, b):
    return (a + b - 1) // b * b


def _ses_1x1_kernel(w_ref, x_ref, o_ref, acc_ref):
    """w_ref:   (scale_size, Cout, Cin)   resident weights.
       x_ref:   (1, S, Cin, tn)           one batch element, all scales, one lane tile.
       o_ref:   (1, S, Cout, tn)
       acc_ref: (S, Cout, tn) f32         VMEM accumulator scratch.
    """
    scale_size = w_ref.shape[0]
    S = x_ref.shape[1]
    # S and scale_size are tiny; unroll at trace time.  The scale boundary
    # (s + k >= S contributes zero) is resolved statically -> no runtime branches.
    # Tap k == 0 touches every output scale, so it initializes the accumulator.
    for s in range(S):
        acc_ref[s] = jnp.dot(w_ref[0], x_ref[0, s],
                             preferred_element_type=jnp.float32)
    for k in range(1, scale_size):
        for s in range(S - k):
            acc_ref[s] += jnp.dot(w_ref[k], x_ref[0, s + k],
                                  preferred_element_type=jnp.float32)
    # Single dense, lane-aligned store of the whole block.
    o_ref[0] = acc_ref[...].astype(o_ref.dtype)


def _vmem_budget():
    """(block budget, scoped vmem limit) derived from the device's physical VMEM."""
    try:
        phys = int(pltpu.get_tpu_info().vmem_capacity_bytes)
    except Exception:
        phys = 64 * _MIB                      # conservative (v7x-sized) fallback
    vmem_limit = max(16 * _MIB, min(3 * phys // 4, 64 * _MIB))  # ~48 MiB v7x, 64 MiB v5e/v6e
    budget = min(vmem_limit - 8 * _MIB, 32 * _MIB)
    return budget, vmem_limit


def ses_conv_h_h_1x1(x, weight, scale_size=1, stride=1, *, max_tn=2048):
    """Forward pass of SESConv_H_H_1x1 with the hot matmuls inside a Pallas kernel."""
    B, Cin, S, H, W = x.shape
    if weight.ndim == 4:                      # (Cout, Cin, 1, 1) -> (Cout, Cin, 1, 1, 1)
        weight = weight[:, :, None]
    Cout = weight.shape[0]
    assert weight.shape == (Cout, Cin, scale_size, 1, 1)

    # 1x1 spatial kernel + stride => pure spatial subsampling.  The subsample, the
    # transpose to channel-on-sublane layout [B, S, Cin, H'*W'] and the (H, W) merge are
    # one fused XLA relayout pass over x (no separate round trip for stride > 1).
    xs = x[:, :, :, ::stride, ::stride] if stride != 1 else x
    Hs, Ws = xs.shape[3], xs.shape[4]
    HW = Hs * Ws
    x2 = jnp.transpose(xs, (0, 2, 1, 3, 4)).reshape(B, S, Cin, HW)

    # weight [Cout, Cin, k, 1, 1] -> [k, Cout, Cin] (tiny, stays resident in VMEM).
    w3 = jnp.transpose(weight[:, :, :, 0, 0], (2, 0, 1))

    # ---- lane tiling with padding-aware VMEM accounting --------------------
    itemsize = x.dtype.itemsize
    sub = 8 * (4 // itemsize)                 # sublane tile: 8 f32 / 16 bf16 / 32 int8
    cin_p, cout_p = _round_up(Cin, sub), _round_up(Cout, sub)
    cout_pf = _round_up(Cout, 8)              # accumulator scratch is f32
    budget, vmem_limit = _vmem_budget()
    per_lane = (2 * S * (cin_p + cout_p)) * itemsize + S * cout_pf * 4   # dbl-buf x/o + acc
    fixed = 2 * scale_size * cout_p * _round_up(Cin, 128) * itemsize     # resident weight
    fixed += 1 * _MIB                                                    # compiler scratch
    avail = max(budget - fixed, 128 * per_lane)
    tn_target = max(128, min(max_tn, (avail // per_lane) // 128 * 128))

    HWp = _round_up(HW, 128)                  # lane-dense even for tiny H'*W'
    n_tiles = pl.cdiv(HWp, tn_target)
    tn = _round_up(pl.cdiv(HWp, n_tiles), 128)
    n_tiles = pl.cdiv(HWp, tn)
    if B * n_tiles == 1 and HWp >= 256:
        # Guarantee >= 2 balanced grid steps so both v7x TensorCores get work.
        tn = _round_up(pl.cdiv(HWp, 2), 128)
        n_tiles = pl.cdiv(HWp, tn)
    Np = tn * n_tiles
    if Np != HW:
        x2 = jnp.pad(x2, ((0, 0), (0, 0), (0, 0), (0, Np - HW)))

    n_taps = sum(max(S - k, 0) for k in range(scale_size))
    cost = pl.CostEstimate(
        flops=2 * B * Np * Cout * Cin * n_taps,
        transcendentals=0,
        bytes_accessed=(B * S * (Cin + Cout) * Np + int(w3.size)) * itemsize)

    out = pl.pallas_call(
        _ses_1x1_kernel,
        out_shape=jax.ShapeDtypeStruct((B, S, Cout, Np), x.dtype),
        grid_spec=pltpu.PrefetchScalarGridSpec(
            num_scalar_prefetch=0,
            grid=(B, n_tiles),
            in_specs=[
                pl.BlockSpec((scale_size, Cout, Cin), lambda b, j: (0, 0, 0)),
                pl.BlockSpec((1, S, Cin, tn), lambda b, j: (b, 0, 0, j)),
            ],
            out_specs=pl.BlockSpec((1, S, Cout, tn), lambda b, j: (b, 0, 0, j)),
            scratch_shapes=[pltpu.VMEM((S, Cout, tn), jnp.float32)],
        ),
        compiler_params=pltpu.CompilerParams(
            dimension_semantics=("parallel", "parallel"),
            vmem_limit_bytes=int(vmem_limit)),
        cost_estimate=cost,
    )(w3, x2)

    # Epilogue: drop lane padding, split (H', W'), restore [B, Cout, S, H', W'].
    out = out[:, :, :, :HW].reshape(B, S, Cout, Hs, Ws)
    return jnp.transpose(out, (0, 2, 1, 3, 4))


def init_weight(key, out_channels, in_channels, scale_size):
    """Deterministic kaiming_uniform_(a=sqrt(5)) init matching the PyTorch module."""
    if scale_size > 1:
        shape = (out_channels, in_channels, scale_size, 1, 1)
        fan_in = in_channels * scale_size
    else:
        shape = (out_channels, in_channels, 1, 1)
        fan_in = in_channels
    bound = 1.0 / np.sqrt(fan_in)  # gain*sqrt(3/fan_in) with a=sqrt(5) -> 1/sqrt(fan_in)
    return jax.random.uniform(key, shape, jnp.float32, -bound, bound)


def reference(x, weight, scale_size, stride):
    """Pure-JAX reference of the PyTorch forward (conv3d + slice)."""
    if weight.ndim == 4:
        weight = weight[:, :, None]
    S = x.shape[2]
    pad = scale_size - 1
    xs = x[:, :, :, ::stride, ::stride]
    xp = jnp.pad(xs, ((0, 0), (0, 0), (0, pad), (0, 0), (0, 0)))
    out = 0.0
    for k in range(scale_size):
        out = out + jnp.einsum(
            'oc,bcshw->boshw', weight[:, :, k, 0, 0], xp[:, :, k:k + S])
    return out


if __name__ == "__main__":
    key = jax.random.PRNGKey(0)
    kx, kw1, kw2 = jax.random.split(key, 3)

    ok = True

    B, Cin, Cout, S, H, W = 2, 4, 8, 3, 16, 16
    x = jax.random.normal(kx, (B, Cin, S, H, W), jnp.float32)

    # Config 1: scale_size=2, stride=2 (5-D weight branch, HW < 128 lane-padded path)
    w = init_weight(kw1, Cout, Cin, scale_size=2)
    y = jax.block_until_ready(ses_conv_h_h_1x1(x, w, scale_size=2, stride=2))
    y_ref = reference(x, w, scale_size=2, stride=2)
    ok &= bool(np.allclose(np.asarray(y), np.asarray(y_ref), rtol=1e-5, atol=1e-5))

    # Config 2: scale_size=1, stride=1 (4-D weight branch, single lane tile)
    w1 = init_weight(kw2, Cout, Cin, scale_size=1)
    y1 = jax.block_until_ready(ses_conv_h_h_1x1(x, w1, scale_size=1, stride=1))
    y1_ref = reference(x, w1, scale_size=1, stride=1)
    ok &= bool(np.allclose(np.asarray(y1), np.asarray(y1_ref), rtol=1e-5, atol=1e-5))

    # Config 3: force multiple lane tiles (grid = (B, 2)) with a small max_tn
    y2 = jax.block_until_ready(ses_conv_h_h_1x1(x, w, scale_size=2, stride=1, max_tn=128))
    y2_ref = reference(x, w, scale_size=2, stride=1)
    ok &= bool(np.allclose(np.asarray(y2), np.asarray(y2_ref), rtol=1e-5, atol=1e-5))

    # Config 4: non-multiple-of-128 spatial size exercises the lane-padding path
    x4 = x[:, :, :, :15, :15]
    y4 = jax.block_until_ready(ses_conv_h_h_1x1(x4, w, scale_size=2, stride=1))
    y4_ref = reference(x4, w, scale_size=2, stride=1)
    ok &= bool(np.allclose(np.asarray(y4), np.asarray(y4_ref), rtol=1e-5, atol=1e-5))

    print("KERNEL_OK" if ok else "MISMATCH")
</pallas_src>

<mosaic_0001>
module attributes {stable_mosaic.version = 11 : i64} {
  func.func @_ses_1x1_kernel(%arg0: i32, %arg1: i32, %arg2: memref<2x8x4xf32, #tpu.memory_space<vmem>>, %arg3: memref<1x3x4x128xf32, #tpu.memory_space<vmem>>, %arg4: memref<1x3x8x128xf32, #tpu.memory_space<vmem>>, %arg5: memref<3x8x128xf32, #tpu.memory_space<vmem>>) attributes {dimension_semantics = [#tpu.dimension_semantics<parallel>, #tpu.dimension_semantics<parallel>], iteration_bounds = array<i64: 2, 1>, scalar_prefetch = 0 : i64, scratch_operands = 1 : i64, tpu.core_type = #tpu.core_type<tc>, window_params = [{pipeline_mode = #tpu.pipeline_mode<synchronous>, transform_indices = @transform_0, window_bounds = array<i64: 2, 8, 4>}, {transform_indices = @transform_1, window_bounds = array<i64: 1, 3, 4, 128>}, {transform_indices = @transform_2, window_bounds = array<i64: 1, 3, 8, 128>}]} {
    %c0 = arith.constant 0 : index
    %c0_0 = arith.constant 0 : index
    %c0_1 = arith.constant 0 : index
    %0 = vector.load %arg2[%c0, %c0_0, %c0_1] : memref<2x8x4xf32, #tpu.memory_space<vmem>>, vector<1x8x4xf32>
    %1 = vector.shape_cast %0 : vector<1x8x4xf32> to vector<8x4xf32>
    %c0_2 = arith.constant 0 : index
    %c0_3 = arith.constant 0 : index
    %c0_4 = arith.constant 0 : index
    %c0_5 = arith.constant 0 : index
    %2 = vector.load %arg3[%c0_2, %c0_3, %c0_4, %c0_5] : memref<1x3x4x128xf32, #tpu.memory_space<vmem>>, vector<1x1x4x128xf32>
    %3 = vector.shape_cast %2 : vector<1x1x4x128xf32> to vector<4x128xf32>
    %cst = arith.constant dense<0.000000e+00> : vector<8x128xf32>
    %4 = tpu.matmul %1, %3, %cst {dimension_numbers = #tpu.dot_dimension_numbers<[1], [0], [0], [1], [0, 0, 1, 1], [], []>} : vector<8x4xf32>, vector<4x128xf32>, vector<8x128xf32> -> vector<8x128xf32>
    %c0_6 = arith.constant 0 : index
    %c0_7 = arith.constant 0 : index
    %c0_8 = arith.constant 0 : index
    %5 = vector.load %arg5[%c0_6, %c0_7, %c0_8] : memref<3x8x128xf32, #tpu.memory_space<vmem>>, vector<1x8x128xf32>
    %6 = vector.shape_cast %5 : vector<1x8x128xf32> to vector<8x128xf32>
    %7 = vector.shape_cast %4 : vector<8x128xf32> to vector<1x8x128xf32>
    tpu.vector_store %arg5[%c0_6, %c0_7, %c0_8], %7 {strides = array<i32>} : memref<3x8x128xf32, #tpu.memory_space<vmem>>, vector<1x8x128xf32>,
    %c0_9 = arith.constant 0 : index
    %c0_10 = arith.constant 0 : index
    %c0_11 = arith.constant 0 : index
    %8 = vector.load %arg2[%c0_9, %c0_10, %c0_11] : memref<2x8x4xf32, #tpu.memory_space<vmem>>, vector<1x8x4xf32>
    %9 = vector.shape_cast %8 : vector<1x8x4xf32> to vector<8x4xf32>
    %c0_12 = arith.constant 0 : index
    %c1 = arith.constant 1 : index
    %c0_13 = arith.constant 0 : index
    %c0_14 = arith.constant 0 : index
    %10 = vector.load %arg3[%c0_12, %c1, %c0_13, %c0_14] : memref<1x3x4x128xf32, #tpu.memory_space<vmem>>, vector<1x1x4x128xf32>
    %11 = vector.shape_cast %10 : vector<1x1x4x128xf32> to vector<4x128xf32>
    %cst_15 = arith.constant dense<0.000000e+00> : vector<8x128xf32>
    %12 = tpu.matmul %9, %11, %cst_15 {dimension_numbers = #tpu.dot_dimension_numbers<[1], [0], [0], [1], [0, 0, 1, 1], [], []>} : vector<8x4xf32>, vector<4x128xf32>, vector<8x128xf32> -> vector<8x128xf32>
    %c1_16 = arith.constant 1 : index
    %c0_17 = arith.constant 0 : index
    %c0_18 = arith.constant 0 : index
    %13 = vector.load %arg5[%c1_16, %c0_17, %c0_18] : memref<3x8x128xf32, #tpu.memory_space<vmem>>, vector<1x8x128xf32>
    %14 = vector.shape_cast %13 : vector<1x8x128xf32> to vector<8x128xf32>
    %15 = vector.shape_cast %12 : vector<8x128xf32> to vector<1x8x128xf32>
    tpu.vector_store %arg5[%c1_16, %c0_17, %c0_18], %15 {strides = array<i32>} : memref<3x8x128xf32, #tpu.memory_space<vmem>>, vector<1x8x128xf32>,
    %c0_19 = arith.constant 0 : index
    %c0_20 = arith.constant 0 : index
    %c0_21 = arith.constant 0 : index
    %16 = vector.load %arg2[%c0_19, %c0_20, %c0_21] : memref<2x8x4xf32, #tpu.memory_space<vmem>>, vector<1x8x4xf32>
    %17 = vector.shape_cast %16 : vector<1x8x4xf32> to vector<8x4xf32>
    %c0_22 = arith.constant 0 : index
    %c2 = arith.constant 2 : index
    %c0_23 = arith.constant 0 : index
    %c0_24 = arith.constant 0 : index
    %18 = vector.load %arg3[%c0_22, %c2, %c0_23, %c0_24] : memref<1x3x4x128xf32, #tpu.memory_space<vmem>>, vector<1x1x4x128xf32>
    %19 = vector.shape_cast %18 : vector<1x1x4x128xf32> to vector<4x128xf32>
    %cst_25 = arith.constant dense<0.000000e+00> : vector<8x128xf32>
    %20 = tpu.matmul %17, %19, %cst_25 {dimension_numbers = #tpu.dot_dimension_numbers<[1], [0], [0], [1], [0, 0, 1, 1], [], []>} : vector<8x4xf32>, vector<4x128xf32>, vector<8x128xf32> -> vector<8x128xf32>
    %c2_26 = arith.constant 2 : index
    %c0_27 = arith.constant 0 : index
    %c0_28 = arith.constant 0 : index
    %21 = vector.load %arg5[%c2_26, %c0_27, %c0_28] : memref<3x8x128xf32, #tpu.memory_space<vmem>>, vector<1x8x128xf32>
    %22 = vector.shape_cast %21 : vector<1x8x128xf32> to vector<8x128xf32>
    %23 = vector.shape_cast %20 : vector<8x128xf32> to vector<1x8x128xf32>
    tpu.vector_store %arg5[%c2_26, %c0_27, %c0_28], %23 {strides = array<i32>} : memref<3x8x128xf32, #tpu.memory_space<vmem>>, vector<1x8x128xf32>,
    %c0_29 = arith.constant 0 : index
    %c0_30 = arith.constant 0 : index
    %c0_31 = arith.constant 0 : index
    %24 = vector.load %arg5[%c0_29, %c0_30, %c0_31] : memref<3x8x128xf32, #tpu.memory_space<vmem>>, vector<1x8x128xf32>
    %25 = vector.shape_cast %24 : vector<1x8x128xf32> to vector<8x128xf32>
    %c1_32 = arith.constant 1 : index
    %c0_33 = arith.constant 0 : index
    %c0_34 = arith.constant 0 : index
    %26 = vector.load %arg2[%c1_32, %c0_33, %c0_34] : memref<2x8x4xf32, #tpu.memory_space<vmem>>, vector<1x8x4xf32>
    %27 = vector.shape_cast %26 : vector<1x8x4xf32> to vector<8x4xf32>
    %c0_35 = arith.constant 0 : index
    %c1_36 = arith.constant 1 : index
    %c0_37 = arith.constant 0 : index
    %c0_38 = arith.constant 0 : index
    %28 = vector.load %arg3[%c0_35, %c1_36, %c0_37, %c0_38] : memref<1x3x4x128xf32, #tpu.memory_space<vmem>>, vector<1x1x4x128xf32>
    %29 = vector.shape_cast %28 : vector<1x1x4x128xf32> to vector<4x128xf32>
    %cst_39 = arith.constant dense<0.000000e+00> : vector<8x128xf32>
    %30 = tpu.matmul %27, %29, %cst_39 {dimension_numbers = #tpu.dot_dimension_numbers<[1], [0], [0], [1], [0, 0, 1, 1], [], []>} : vector<8x4xf32>, vector<4x128xf32>, vector<8x128xf32> -> vector<8x128xf32>
    %31 = arith.addf %25, %30 : vector<8x128xf32>
    %c0_40 = arith.constant 0 : index
    %c0_41 = arith.constant 0 : index
    %c0_42 = arith.constant 0 : index
    %32 = vector.load %arg5[%c0_40, %c0_41, %c0_42] : memref<3x8x128xf32, #tpu.memory_space<vmem>>, vector<1x8x128xf32>
    %33 = vector.shape_cast %32 : vector<1x8x128xf32> to vector<8x128xf32>
    %34 = vector.shape_cast %31 : vector<8x128xf32> to vector<1x8x128xf32>
    tpu.vector_store %arg5[%c0_40, %c0_41, %c0_42], %34 {strides = array<i32>} : memref<3x8x128xf32, #tpu.memory_space<vmem>>, vector<1x8x128xf32>,
    %c1_43 = arith.constant 1 : index
    %c0_44 = arith.constant 0 : index
    %c0_45 = arith.constant 0 : index
    %35 = vector.load %arg5[%c1_43, %c0_44, %c0_45] : memref<3x8x128xf32, #tpu.memory_space<vmem>>, vector<1x8x128xf32>
    %36 = vector.shape_cast %35 : vector<1x8x128xf32> to vector<8x128xf32>
    %c1_46 = arith.constant 1 : index
    %c0_47 = arith.constant 0 : index
    %c0_48 = arith.constant 0 : index
    %37 = vector.load %arg2[%c1_46, %c0_47, %c0_48] : memref<2x8x4xf32, #tpu.memory_space<vmem>>, vector<1x8x4xf32>
    %38 = vector.shape_cast %37 : vector<1x8x4xf32> to vector<8x4xf32>
    %c0_49 = arith.constant 0 : index
    %c2_50 = arith.constant 2 : index
    %c0_51 = arith.constant 0 : index
    %c0_52 = arith.constant 0 : index
    %39 = vector.load %arg3[%c0_49, %c2_50, %c0_51, %c0_52] : memref<1x3x4x128xf32, #tpu.memory_space<vmem>>, vector<1x1x4x128xf32>
    %40 = vector.shape_cast %39 : vector<1x1x4x128xf32> to vector<4x128xf32>
    %cst_53 = arith.constant dense<0.000000e+00> : vector<8x128xf32>
    %41 = tpu.matmul %38, %40, %cst_53 {dimension_numbers = #tpu.dot_dimension_numbers<[1], [0], [0], [1], [0, 0, 1, 1], [], []>} : vector<8x4xf32>, vector<4x128xf32>, vector<8x128xf32> -> vector<8x128xf32>
    %42 = arith.addf %36, %41 : vector<8x128xf32>
    %c1_54 = arith.constant 1 : index
    %c0_55 = arith.constant 0 : index
    %c0_56 = arith.constant 0 : index
    %43 = vector.load %arg5[%c1_54, %c0_55, %c0_56] : memref<3x8x128xf32, #tpu.memory_space<vmem>>, vector<1x8x128xf32>
    %44 = vector.shape_cast %43 : vector<1x8x128xf32> to vector<8x128xf32>
    %45 = vector.shape_cast %42 : vector<8x128xf32> to vector<1x8x128xf32>
    tpu.vector_store %arg5[%c1_54, %c0_55, %c0_56], %45 {strides = array<i32>} : memref<3x8x128xf32, #tpu.memory_space<vmem>>, vector<1x8x128xf32>,
    %c0_57 = arith.constant 0 : index
    %c0_58 = arith.constant 0 : index
    %c0_59 = arith.constant 0 : index
    %46 = vector.load %arg5[%c0_57, %c0_58, %c0_59] : memref<3x8x128xf32, #tpu.memory_space<vmem>>, vector<3x8x128xf32>
    %c0_60 = arith.constant 0 : index
    %c0_61 = arith.constant 0 : index
    %c0_62 = arith.constant 0 : index
    %c0_63 = arith.constant 0 : index
    %47 = vector.load %arg4[%c0_60, %c0_61, %c0_62, %c0_63] : memref<1x3x8x128xf32, #tpu.memory_space<vmem>>, vector<1x3x8x128xf32>
    %48 = vector.shape_cast %47 : vector<1x3x8x128xf32> to vector<3x8x128xf32>
    %49 = vector.shape_cast %46 : vector<3x8x128xf32> to vector<1x3x8x128xf32>
    tpu.vector_store %arg4[%c0_60, %c0_61, %c0_62, %c0_63], %49 {strides = array<i32>} : memref<1x3x8x128xf32, #tpu.memory_space<vmem>>, vector<1x3x8x128xf32>,
    return
  }
  func.func @transform_0(%arg0: i32, %arg1: i32) -> (i32, i32, i32) {
    %c0_i32 = arith.constant 0 : i32
    %c0_i32_0 = arith.constant 0 : i32
    %c0_i32_1 = arith.constant 0 : i32
    %c0_i32_2 = arith.constant 0 : i32
    return %c0_i32, %c0_i32_0, %c0_i32_1 : i32, i32, i32
  }
  func.func @transform_1(%arg0: i32, %arg1: i32) -> (i32, i32, i32, i32) {
    %c0_i32 = arith.constant 0 : i32
    %c0_i32_0 = arith.constant 0 : i32
    %c0_i32_1 = arith.constant 0 : i32
    return %arg0, %c0_i32, %c0_i32_0, %arg1 : i32, i32, i32, i32
  }
  func.func @transform_2(%arg0: i32, %arg1: i32) -> (i32, i32, i32, i32) {
    %c0_i32 = arith.constant 0 : i32
    %c0_i32_0 = arith.constant 0 : i32
    %c0_i32_1 = arith.constant 0 : i32
    return %arg0, %c0_i32, %c0_i32_0, %arg1 : i32, i32, i32, i32
  }
}

</mosaic_0001>

<llo_original>
// kernel: tpu_custom_call.1
$region0: #{tpu_custom_call.1}
  #allocation0 [shape = 'u32[]', space=smem, size = 0x4, offset = 0x4, fixed_abs, tag = 'smem constant byte address 0x4 - core index']
  #allocation1 [shape = 'u32[144,128]{1,0:T(1,128)}', space=vmem, size = 0x12000, scoped, tag = 'internal scratch']
  #allocation2 [shape = 'f32[3,8,128]{2,1,0:T(8,128)}', space=vmem, size = 0x3000, scoped, tag = 'scratch operand']
  %s0 = inlined_call_operand.vmem [shape: f32[2,8,4], index: 0, kind: input, shape index: {}]
  %s1 = inlined_call_operand.vmem [shape: f32[2,3,4,128], index: 1, kind: input, shape index: {}]
  %s2 = inlined_call_operand.hbm [shape: f32[2,3,8,128], index: 2, kind: output, shape index: {}]
  %s3 = sld [smem:[#allocation0]]
  $region41: #{tpu_custom_call.1} parent=0
    _
  %s5 = ssub.s32 1, %s3
  %s6 = scalar_select 0, %s5, %s3
  $region1: #{tpu_custom_call.1} parent=0
    #allocation3 [shape = 'u8[24576]{0}', space=vmem, size = 0x6000, scoped, tag = 'output window, operand 0']
    #allocation4 [shape = 's32[2]{0}', space=sflag, size = 0x8, scoped, tag = 'scoped memory for tpu_custom_call.1']
    %7 = vsyncpa [#allocation4], 0
    %s8 = scalar_lea.sflag [#allocation4], 1
    %9 = vsyncpa %s8, 0
    loop: start=0, step=1, limit=4
    $region2: #{tpu_custom_call.1} parent=1 // loop_pre_header
      _
    $region3: #{tpu_custom_call.1} parent=1 // loop_header
      %s11 = sphi 0, %s15
      %p12 = scmp.ge.s32.totalorder %s11, 4
      %s18 = sphi 0, %s30
      %s19 = sphi 0, %s26
      %s20 = sphi 0, %s18
      %s21 = sphi 0, %s19
      %s22 = sphi 0, %s20
      %s23 = sphi 0, %s21
      %s31 = sphi 0, %s31
      %s33 = sphi 0, %s31
      %s34 = sphi 0, %s33
      %s48 = sphi 0, %s34
      %s56 = sphi 0, %s58
      %s59 = sphi 0, %s56
      %s60 = sphi 0, %s59
      %s76 = sphi 0, %s60
      %s84 = sphi 0, %s86
      %s87 = sphi 0, %s84
      %s88 = sphi 0, %s87
      %s104 = sphi 0, %s88
    $region4: #{tpu_custom_call.1} parent=1 // loop_header_branch
      %14 = sbr.rel (%p12) target = $region8
    $region5: #{tpu_custom_call.1} parent=1 // loop_body
      %s16 = ssub.s32 %s11, 1
      %s17 = ssub.s32 %s11, 2
      %s24 = sadd.s32 1, %s19
      %p25 = scmp.ge.s32.totalorder %s24, 1
      %s26 = scalar_select %p25, 0, %s24
      %s27 = sadd.s32 1, %s18
      %s28 = scalar_select %p25, %s27, %s18
      %p29 = scmp.ge.s32.totalorder %s28, 2
      %s30 = scalar_select %p29, 0, %s28
      %s32 = sadd.s32 %s31, 1
      %p35 = scmp.eq.s32.totalorder %s11, 1
      %p36 = scmp.ne.s32.totalorder %s31, %s33
      %p37 = scmp.eq.s32.totalorder %s11, 0
      %p38 = por %p36, %p37
      %p39 = scmp.ne.s32.totalorder %s31, %s33
      %p40 = scmp.eq.s32.totalorder %s16, 1
      %p41 = por %p39, %p40
      %p42 = scmp.ne.s32.totalorder %s33, %s34
      %p43 = scmp.eq.s32.totalorder %s16, 0
      %p44 = por %p42, %p43
      %p45 = scmp.ne.s32.totalorder %s33, %s34
      %p46 = scmp.eq.s32.totalorder %s17, 1
      %p47 = por %p45, %p46
      %p49 = scmp.ne.s32.totalorder %s34, %s48
      %p50 = scmp.eq.s32.totalorder %s17, 0
      %p51 = por %p49, %p50
      %s52 = ssub.s32 %s18, %s30
      %s53 = ssub.s32 %s19, %s26
      %s54 = sor.u32 %s52, %s53
      %p55 = scmp.eq.s32.totalorder %s54, 0
      %s57 = sadd.s32 %s56, 1
      %s58 = scalar_select %p55, %s56, %s57
      %p61 = pneg %p55
      %p62 = scmp.eq.s32.totalorder %s11, 1
      %p63 = por %p61, %p62
      %p64 = scmp.ne.s32.totalorder %s56, %s59
      %p65 = scmp.eq.s32.totalorder %s11, 0
      %p66 = por %p64, %p65
      %p67 = scmp.ne.s32.totalorder %s56, %s59
      %p68 = scmp.eq.s32.totalorder %s16, 1
      %p69 = por %p67, %p68
      %p70 = scmp.ne.s32.totalorder %s59, %s60
      %p71 = scmp.eq.s32.totalorder %s16, 0
      %p72 = por %p70, %p71
      %p73 = scmp.ne.s32.totalorder %s59, %s60
      %p74 = scmp.eq.s32.totalorder %s17, 1
      %p75 = por %p73, %p74
      %p77 = scmp.ne.s32.totalorder %s60, %s76
      %p78 = scmp.eq.s32.totalorder %s17, 0
      %p79 = por %p77, %p78
      %s80 = ssub.s32 %s18, %s30
      %s81 = ssub.s32 %s19, %s26
      %s82 = sor.u32 %s80, %s81
      %p83 = scmp.eq.s32.totalorder %s82, 0
      %s85 = sadd.s32 %s84, 1
      %s86 = scalar_select %p83, %s84, %s85
      %p89 = pneg %p83
      %p90 = scmp.eq.s32.totalorder %s11, 1
      %p91 = por %p89, %p90
      %p92 = scmp.ne.s32.totalorder %s84, %s87
      %p93 = scmp.eq.s32.totalorder %s11, 0
      %p94 = por %p92, %p93
      %p95 = scmp.ne.s32.totalorder %s84, %s87
      %p96 = scmp.eq.s32.totalorder %s16, 1
      %p97 = por %p95, %p96
      %p98 = scmp.ne.s32.totalorder %s87, %s88
      %p99 = scmp.eq.s32.totalorder %s16, 0
      %p100 = por %p98, %p99
      %p101 = scmp.ne.s32.totalorder %s87, %s88
      %p102 = scmp.eq.s32.totalorder %s17, 1
      %p103 = por %p101, %p102
      %p105 = scmp.ne.s32.totalorder %s88, %s104
      %p106 = scmp.eq.s32.totalorder %s17, 0
      %p107 = por %p105, %p106
      %p108 = scmp.le.s32.totalorder 1, %s11
      %p109 = scmp.lt.s32.totalorder %s11, 3
      %p110 = pnand %p108, %p109
      %p111 = pneg %p110
      // Predicated region
      $region9: #{tpu_custom_call.1} parent=5 // pred_check
        _
      $region10: #{tpu_custom_call.1} parent=5 // pred_check_branch
        %113 = sbr.rel (%p110) target = $region12
      $region11: #{tpu_custom_call.1} parent=5 // pred_region
        %s114 = ssub.s32 %s11, 1
        // Predicated region
        $region13: #{tpu_custom_call.1} parent=11 // pred_check
          %p115 = pneg %p44
        $region14: #{tpu_custom_call.1} parent=11 // pred_check_branch
          %117 = sbr.rel (%p115) target = $region16
        $region15: #{tpu_custom_call.1} parent=11 // pred_region
          _
        $region16: #{tpu_custom_call.1} parent=11 // pred_fallthru
          _
      $region12: #{tpu_custom_call.1} parent=5 // pred_fallthru
        _
      %p118 = scmp.lt.s32.totalorder %s11, 2
      // Predicated region
      $region17: #{tpu_custom_call.1} parent=5 // pred_check
        %p119 = pneg %p118
      $region18: #{tpu_custom_call.1} parent=5 // pred_check_branch
        %121 = sbr.rel (%p119) target = $region20
      $region19: #{tpu_custom_call.1} parent=5 // pred_region
        // Predicated region
        $region21: #{tpu_custom_call.1} parent=19 // pred_check
          %p122 = pneg %p66
        $region22: #{tpu_custom_call.1} parent=19 // pred_check_branch
          %124 = sbr.rel (%p122) target = $region24
        $region23: #{tpu_custom_call.1} parent=19 // pred_region
          %p125 = scmp.lt.s32.totalorder %s18, 1
          %s126 = scalar_select %p125, %s18, 1
          %p127 = scmp.lt.s32.totalorder %s19, 0
          %s128 = scalar_select %p127, %s19, 0
          %s129 = smul.addr %s126, 3
          %s130 = sadd.s32 %s128, %s129
          %s131 = smul.addr %s130, 4
          %s132 = scalar_lea.vmem %s1, %s131
        $region24: #{tpu_custom_call.1} parent=19 // pred_fallthru
          _
      $region20: #{tpu_custom_call.1} parent=5 // pred_fallthru
        _
      %p133 = scmp.le.s32.totalorder 1, %s11
      %p134 = scmp.lt.s32.totalorder %s11, 3
      %p135 = pnand %p133, %p134
      %p136 = pneg %p135
      // Predicated region
      $region25: #{tpu_custom_call.1} parent=5 // pred_check
        _
      $region26: #{tpu_custom_call.1} parent=5 // pred_check_branch
        %138 = sbr.rel (%p135) target = $region28
      $region27: #{tpu_custom_call.1} parent=5 // pred_region
        %s139 = ssub.s32 %s11, 1
        %p140 = pneg %p44
        %p141 = pneg %p41
        %p142 = scmp.lt.s32.totalorder %s20, 1
        %s143 = scalar_select %p142, %s20, 1
        %p144 = scmp.lt.s32.totalorder %s21, 0
        %s145 = scalar_select %p144, %s21, 0
        %s146 = smul.addr %s143, 3
        %s147 = sadd.s32 %s145, %s146
        %s148 = smul.addr %s147, 4
        %s149 = scalar_lea.vmem %s1, %s148
        %p150 = pneg %p72
        %p151 = pneg %p69
        %p152 = pneg %p100
        %p153 = pneg %p97
        %s154 = sand.u32 %s87, 1
        %s155 = scalar_lea.sflag [#allocation4], %s154
        %s156 = sand.u32 %s87, 1
        %s157 = smul.addr %s156, 24
        %s158 = scalar_lea.vmem [#allocation3], %s157
        %p159 = scmp.lt.s32.totalorder %s20, 1
        %s160 = scalar_select %p159, %s20, 1
        %p161 = scmp.lt.s32.totalorder %s21, 0
        %s162 = scalar_select %p161, %s21, 0
        %s163 = smul.addr %s160, 3
        %s164 = sadd.s32 %s162, %s163
        %s165 = smul.addr %s164, 4
        %s166 = scalar_lea.vmem %s1, %s165
        %v167 = vld [vmem:[%s0] sm:$0xff]
        %v168 = vld [vmem:[%s166] sm:$0xf]
        %vm169 = vcmask 31744
        %v171 = vsel %vm169, %v167, 0
        %vm173 = vcmask 1043456
        %v175 = vsel %vm173, %v168, 0
        %177 = vmatprep.subr.mxu0 0.0
        %178 = vmatpush1.msra.mxu0 %v175
        %179 = vmatprep.subr.mxu0 0.0
        %180 = vmatpush1.msra.mxu0 0.0
        %181 = vmatprep.subr.mxu0 0.0
        %182 = vmatpush1.msra.mxu0 0.0
        %183 = vmatprep.subr.mxu0 0.0
        %184 = vmatpush1.msra.mxu0 0.0
        %185 = vmatprep.subr.mxu0 0.0
        %186 = vmatpush1.msra.mxu0 0.0
        %187 = vmatprep.subr.mxu0 0.0
        %188 = vmatpush1.msra.mxu0 0.0
        %189 = vmatprep.subr.mxu0 0.0
        %190 = vmatpush1.msra.mxu0 0.0
        %191 = vmatprep.subr.mxu0 0.0
        %192 = vmatpush1.msra.mxu0 0.0
        %193 = vmatprep.subr.mxu0 0.0
        %194 = vmatpush1.msra.mxu0 0.0
        %195 = vmatprep.subr.mxu0 0.0
        %196 = vmatpush1.msra.mxu0 0.0
        %197 = vmatprep.subr.mxu0 0.0
        %198 = vmatpush1.msra.mxu0 0.0
        %199 = vmatprep.subr.mxu0 0.0
        %200 = vmatpush1.msra.mxu0 0.0
        %201 = vmatprep.subr.mxu0 0.0
        %202 = vmatpush1.msra.mxu0 0.0
        %203 = vmatprep.subr.mxu0 0.0
        %204 = vmatpush1.msra.mxu0 0.0
        %205 = vmatprep.subr.mxu0 0.0
        %206 = vmatpush1.msra.mxu0 0.0
        %207 = vmatprep.subr.mxu0 0.0
        %208 = vmatpush1.msra.mxu0 0.0
        %209 = vmatprep.subr.mxu0 0.0
        %210 = vmatpush1.msra.mxu0 0.0
        %211 = vmatprep.subr.mxu0 0.0
        %212 = vmatpush1.msra.mxu0 0.0
        %213 = vmatprep.subr.mxu0 0.0
        %214 = vmatpush1.msra.mxu0 0.0
        %215 = vmatprep.subr.mxu0 0.0
        %216 = vmatpush1.msra.mxu0 0.0
        %217 = vmatprep.subr.mxu0 0.0
        %218 = vmatpush1.msra.mxu0 0.0
        %219 = vmatprep.subr.mxu0 0.0
        %220 = vmatpush1.msra.mxu0 0.0
        %221 = vmatprep.subr.mxu0 0.0
        %222 = vmatpush1.msra.mxu0 0.0
        %223 = vmatprep.subr.mxu0 0.0
        %224 = vmatpush1.msra.mxu0 0.0
        %225 = vmatprep.subr.mxu0 0.0
        %226 = vmatpush1.msra.mxu0 0.0
        %227 = vmatprep.subr.mxu0 0.0
        %228 = vmatpush1.msra.mxu0 0.0
        %229 = vmatprep.subr.mxu0 0.0
        %230 = vmatpush1.msra.mxu0 0.0
        %231 = vmatprep.subr.mxu0 0.0
        %232 = vmatpush1.msra.mxu0 0.0
        %233 = vmatprep.subr.mxu0 0.0
        %234 = vmatpush1.msra.mxu0 0.0
        %235 = vmatprep.subr.mxu0 0.0
        %236 = vmatpush1.msra.mxu0 0.0
        %237 = vmatprep.subr.mxu0 0.0
        %238 = vmatpush1.msra.mxu0 0.0
        %239 = vmatprep.subr.mxu0 0.0
        %240 = vmatpush1.msra.mxu0 0.0
        %241 = vmatprep.mubr.f32.mxu0 0.0
        %242 = vmatmul.mubr.f32.gmra.mrb[0].mxu0 %v171
        %v243 = vpop.f32.mrb[0].mxu0
        %v244 = vadd.f32 0.0, %v243
        %v245 = vpop.f32.mrb[0].mxu0
        %246 = vdwg.mxu0
        %247 = vst [vmem:[#allocation2] sm:$0xff] %v244
        %v248 = vld [vmem:[%s0] sm:$0xff]
        %s249 = scalar_lea.vmem %s166, 4
        %v250 = vld [vmem:[%s249] sm:$0xf]
        %v252 = vsel %vm169, %v248, 0
        %v255 = vsel %vm173, %v250, 0
        %257 = vmatprep.subr.mxu0 0.0
        %258 = vmatpush1.msra.mxu0 %v255
        %259 = vmatprep.subr.mxu0 0.0
        %260 = vmatpush1.msra.mxu0 0.0
        %261 = vmatprep.subr.mxu0 0.0
        %262 = vmatpush1.msra.mxu0 0.0
        %263 = vmatprep.subr.mxu0 0.0
        %264 = vmatpush1.msra.mxu0 0.0
        %265 = vmatprep.subr.mxu0 0.0
        %266 = vmatpush1.msra.mxu0 0.0
        %267 = vmatprep.subr.mxu0 0.0
        %268 = vmatpush1.msra.mxu0 0.0
        %269 = vmatprep.subr.mxu0 0.0
        %270 = vmatpush1.msra.mxu0 0.0
        %271 = vmatprep.subr.mxu0 0.0
        %272 = vmatpush1.msra.mxu0 0.0
        %273 = vmatprep.subr.mxu0 0.0
        %274 = vmatpush1.msra.mxu0 0.0
        %275 = vmatprep.subr.mxu0 0.0
        %276 = vmatpush1.msra.mxu0 0.0
        %277 = vmatprep.subr.mxu0 0.0
        %278 = vmatpush1.msra.mxu0 0.0
        %279 = vmatprep.subr.mxu0 0.0
        %280 = vmatpush1.msra.mxu0 0.0
        %281 = vmatprep.subr.mxu0 0.0
        %282 = vmatpush1.msra.mxu0 0.0
        %283 = vmatprep.subr.mxu0 0.0
        %284 = vmatpush1.msra.mxu0 0.0
        %285 = vmatprep.subr.mxu0 0.0
        %286 = vmatpush1.msra.mxu0 0.0
        %287 = vmatprep.subr.mxu0 0.0
        %288 = vmatpush1.msra.mxu0 0.0
        %289 = vmatprep.subr.mxu0 0.0
        %290 = vmatpush1.msra.mxu0 0.0
        %291 = vmatprep.subr.mxu0 0.0
        %292 = vmatpush1.msra.mxu0 0.0
        %293 = vmatprep.subr.mxu0 0.0
        %294 = vmatpush1.msra.mxu0 0.0
        %295 = vmatprep.subr.mxu0 0.0
        %296 = vmatpush1.msra.mxu0 0.0
        %297 = vmatprep.subr.mxu0 0.0
        %298 = vmatpush1.msra.mxu0 0.0
        %299 = vmatprep.subr.mxu0 0.0
        %300 = vmatpush1.msra.mxu0 0.0
        %301 = vmatprep.subr.mxu0 0.0
        %302 = vmatpush1.msra.mxu0 0.0
        %303 = vmatprep.subr.mxu0 0.0
        %304 = vmatpush1.msra.mxu0 0.0
        %305 = vmatprep.subr.mxu0 0.0
        %306 = vmatpush1.msra.mxu0 0.0
        %307 = vmatprep.subr.mxu0 0.0
        %308 = vmatpush1.msra.mxu0 0.0
        %309 = vmatprep.subr.mxu0 0.0
        %310 = vmatpush1.msra.mxu0 0.0
        %311 = vmatprep.subr.mxu0 0.0
        %312 = vmatpush1.msra.mxu0 0.0
        %313 = vmatprep.subr.mxu0 0.0
        %314 = vmatpush1.msra.mxu0 0.0
        %315 = vmatprep.subr.mxu0 0.0
        %316 = vmatpush1.msra.mxu0 0.0
        %317 = vmatprep.subr.mxu0 0.0
        %318 = vmatpush1.msra.mxu0 0.0
        %319 = vmatprep.subr.mxu0 0.0
        %320 = vmatpush1.msra.mxu0 0.0
        %321 = vmatprep.mubr.f32.mxu0 0.0
        %322 = vmatmul.mubr.f32.gmra.mrb[0].mxu0 %v252
        %v323 = vpop.f32.mrb[0].mxu0
        %v324 = vadd.f32 0.0, %v323
        %v325 = vpop.f32.mrb[0].mxu0
        %326 = vdwg.mxu0
        %s327 = scalar_lea.vmem [#allocation2], 8
        %328 = vst [vmem:[%s327] sm:$0xff] %v324
        %v329 = vld [vmem:[%s0] sm:$0xff]
        %s330 = scalar_lea.vmem %s166, 8
        %v331 = vld [vmem:[%s330] sm:$0xf]
        %v333 = vsel %vm169, %v329, 0
        %v336 = vsel %vm173, %v331, 0
        %338 = vmatprep.subr.mxu0 0.0
        %339 = vmatpush1.msra.mxu0 %v336
        %340 = vmatprep.subr.mxu0 0.0
        %341 = vmatpush1.msra.mxu0 0.0
        %342 = vmatprep.subr.mxu0 0.0
        %343 = vmatpush1.msra.mxu0 0.0
        %344 = vmatprep.subr.mxu0 0.0
        %345 = vmatpush1.msra.mxu0 0.0
        %346 = vmatprep.subr.mxu0 0.0
        %347 = vmatpush1.msra.mxu0 0.0
        %348 = vmatprep.subr.mxu0 0.0
        %349 = vmatpush1.msra.mxu0 0.0
        %350 = vmatprep.subr.mxu0 0.0
        %351 = vmatpush1.msra.mxu0 0.0
        %352 = vmatprep.subr.mxu0 0.0
        %353 = vmatpush1.msra.mxu0 0.0
        %354 = vmatprep.subr.mxu0 0.0
        %355 = vmatpush1.msra.mxu0 0.0
        %356 = vmatprep.subr.mxu0 0.0
        %357 = vmatpush1.msra.mxu0 0.0
        %358 = vmatprep.subr.mxu0 0.0
        %359 = vmatpush1.msra.mxu0 0.0
        %360 = vmatprep.subr.mxu0 0.0
        %361 = vmatpush1.msra.mxu0 0.0
        %362 = vmatprep.subr.mxu0 0.0
        %363 = vmatpush1.msra.mxu0 0.0
        %364 = vmatprep.subr.mxu0 0.0
        %365 = vmatpush1.msra.mxu0 0.0
        %366 = vmatprep.subr.mxu0 0.0
        %367 = vmatpush1.msra.mxu0 0.0
        %368 = vmatprep.subr.mxu0 0.0
        %369 = vmatpush1.msra.mxu0 0.0
        %370 = vmatprep.subr.mxu0 0.0
        %371 = vmatpush1.msra.mxu0 0.0
        %372 = vmatprep.subr.mxu0 0.0
        %373 = vmatpush1.msra.mxu0 0.0
        %374 = vmatprep.subr.mxu0 0.0
        %375 = vmatpush1.msra.mxu0 0.0
        %376 = vmatprep.subr.mxu0 0.0
        %377 = vmatpush1.msra.mxu0 0.0
        %378 = vmatprep.subr.mxu0 0.0
        %379 = vmatpush1.msra.mxu0 0.0
        %380 = vmatprep.subr.mxu0 0.0
        %381 = vmatpush1.msra.mxu0 0.0
        %382 = vmatprep.subr.mxu0 0.0
        %383 = vmatpush1.msra.mxu0 0.0
        %384 = vmatprep.subr.mxu0 0.0
        %385 = vmatpush1.msra.mxu0 0.0
        %386 = vmatprep.subr.mxu0 0.0
        %387 = vmatpush1.msra.mxu0 0.0
        %388 = vmatprep.subr.mxu0 0.0
        %389 = vmatpush1.msra.mxu0 0.0
        %390 = vmatprep.subr.mxu0 0.0
        %391 = vmatpush1.msra.mxu0 0.0
        %392 = vmatprep.subr.mxu0 0.0
        %393 = vmatpush1.msra.mxu0 0.0
        %394 = vmatprep.subr.mxu0 0.0
        %395 = vmatpush1.msra.mxu0 0.0
        %396 = vmatprep.subr.mxu0 0.0
        %397 = vmatpush1.msra.mxu0 0.0
        %398 = vmatprep.subr.mxu0 0.0
        %399 = vmatpush1.msra.mxu0 0.0
        %400 = vmatprep.subr.mxu0 0.0
        %401 = vmatpush1.msra.mxu0 0.0
        %402 = vmatprep.mubr.f32.mxu0 0.0
        %403 = vmatmul.mubr.f32.gmra.mrb[0].mxu0 %v333
        %v404 = vpop.f32.mrb[0].mxu0
        %v405 = vadd.f32 0.0, %v404
        %v406 = vpop.f32.mrb[0].mxu0
        %407 = vdwg.mxu0
        %s408 = scalar_lea.vmem [#allocation2], 16
        %409 = vst [vmem:[%s408] sm:$0xff] %v405
        %v410 = vld [vmem:[#allocation2] sm:$0xff]
        %s411 = scalar_lea.vmem %s0, 8
        %v412 = vld [vmem:[%s411] sm:$0xff]
        %v413 = vld [vmem:[%s249] sm:$0xf]
        %v415 = vsel %vm169, %v412, 0
        %v418 = vsel %vm173, %v413, 0
        %420 = vmatprep.subr.mxu0 0.0
        %421 = vmatpush1.msra.mxu0 %v418
        %422 = vmatprep.subr.mxu0 0.0
        %423 = vmatpush1.msra.mxu0 0.0
        %424 = vmatprep.subr.mxu0 0.0
        %425 = vmatpush1.msra.mxu0 0.0
        %426 = vmatprep.subr.mxu0 0.0
        %427 = vmatpush1.msra.mxu0 0.0
        %428 = vmatprep.subr.mxu0 0.0
        %429 = vmatpush1.msra.mxu0 0.0
        %430 = vmatprep.subr.mxu0 0.0
        %431 = vmatpush1.msra.mxu0 0.0
        %432 = vmatprep.subr.mxu0 0.0
        %433 = vmatpush1.msra.mxu0 0.0
        %434 = vmatprep.subr.mxu0 0.0
        %435 = vmatpush1.msra.mxu0 0.0
        %436 = vmatprep.subr.mxu0 0.0
        %437 = vmatpush1.msra.mxu0 0.0
        %438 = vmatprep.subr.mxu0 0.0
        %439 = vmatpush1.msra.mxu0 0.0
        %440 = vmatprep.subr.mxu0 0.0
        %441 = vmatpush1.msra.mxu0 0.0
        %442 = vmatprep.subr.mxu0 0.0
        %443 = vmatpush1.msra.mxu0 0.0
        %444 = vmatprep.subr.mxu0 0.0
        %445 = vmatpush1.msra.mxu0 0.0
        %446 = vmatprep.subr.mxu0 0.0
        %447 = vmatpush1.msra.mxu0 0.0
        %448 = vmatprep.subr.mxu0 0.0
        %449 = vmatpush1.msra.mxu0 0.0
        %450 = vmatprep.subr.mxu0 0.0
        %451 = vmatpush1.msra.mxu0 0.0
        %452 = vmatprep.subr.mxu0 0.0
        %453 = vmatpush1.msra.mxu0 0.0
        %454 = vmatprep.subr.mxu0 0.0
        %455 = vmatpush1.msra.mxu0 0.0
        %456 = vmatprep.subr.mxu0 0.0
        %457 = vmatpush1.msra.mxu0 0.0
        %458 = vmatprep.subr.mxu0 0.0
        %459 = vmatpush1.msra.mxu0 0.0
        %460 = vmatprep.subr.mxu0 0.0
        %461 = vmatpush1.msra.mxu0 0.0
        %462 = vmatprep.subr.mxu0 0.0
        %463 = vmatpush1.msra.mxu0 0.0
        %464 = vmatprep.subr.mxu0 0.0
        %465 = vmatpush1.msra.mxu0 0.0
        %466 = vmatprep.subr.mxu0 0.0
        %467 = vmatpush1.msra.mxu0 0.0
        %468 = vmatprep.subr.mxu0 0.0
        %469 = vmatpush1.msra.mxu0 0.0
        %470 = vmatprep.subr.mxu0 0.0
        %471 = vmatpush1.msra.mxu0 0.0
        %472 = vmatprep.subr.mxu0 0.0
        %473 = vmatpush1.msra.mxu0 0.0
        %474 = vmatprep.subr.mxu0 0.0
        %475 = vmatpush1.msra.mxu0 0.0
        %476 = vmatprep.subr.mxu0 0.0
        %477 = vmatpush1.msra.mxu0 0.0
        %478 = vmatprep.subr.mxu0 0.0
        %479 = vmatpush1.msra.mxu0 0.0
        %480 = vmatprep.subr.mxu0 0.0
        %481 = vmatpush1.msra.mxu0 0.0
        %482 = vmatprep.subr.mxu0 0.0
        %483 = vmatpush1.msra.mxu0 0.0
        %484 = vmatprep.mubr.f32.mxu0 0.0
        %485 = vmatmul.mubr.f32.gmra.mrb[0].mxu0 %v415
        %v486 = vpop.f32.mrb[0].mxu0
        %v487 = vadd.f32 0.0, %v486
        %v488 = vpop.f32.mrb[0].mxu0
        %489 = vdwg.mxu0
        %v490 = vadd.f32 %v410, %v487
        %491 = vst [vmem:[#allocation2] sm:$0xff] %v490
        %v492 = vld [vmem:[%s327] sm:$0xff]
        %v493 = vld [vmem:[%s411] sm:$0xff]
        %v494 = vld [vmem:[%s330] sm:$0xf]
        %v496 = vsel %vm169, %v493, 0
        %v499 = vsel %vm173, %v494, 0
        %501 = vmatprep.subr.mxu0 0.0
        %502 = vmatpush1.msra.mxu0 %v499
        %503 = vmatprep.subr.mxu0 0.0
        %504 = vmatpush1.msra.mxu0 0.0
        %505 = vmatprep.subr.mxu0 0.0
        %506 = vmatpush1.msra.mxu0 0.0
        %507 = vmatprep.subr.mxu0 0.0
        %508 = vmatpush1.msra.mxu0 0.0
        %509 = vmatprep.subr.mxu0 0.0
        %510 = vmatpush1.msra.mxu0 0.0
        %511 = vmatprep.subr.mxu0 0.0
        %512 = vmatpush1.msra.mxu0 0.0
        %513 = vmatprep.subr.mxu0 0.0
        %514 = vmatpush1.msra.mxu0 0.0
        %515 = vmatprep.subr.mxu0 0.0
        %516 = vmatpush1.msra.mxu0 0.0
        %517 = vmatprep.subr.mxu0 0.0
        %518 = vmatpush1.msra.mxu0 0.0
        %519 = vmatprep.subr.mxu0 0.0
        %520 = vmatpush1.msra.mxu0 0.0
        %521 = vmatprep.subr.mxu0 0.0
        %522 = vmatpush1.msra.mxu0 0.0
        %523 = vmatprep.subr.mxu0 0.0
        %524 = vmatpush1.msra.mxu0 0.0
        %525 = vmatprep.subr.mxu0 0.0
        %526 = vmatpush1.msra.mxu0 0.0
        %527 = vmatprep.subr.mxu0 0.0
        %528 = vmatpush1.msra.mxu0 0.0
        %529 = vmatprep.subr.mxu0 0.0
        %530 = vmatpush1.msra.mxu0 0.0
        %531 = vmatprep.subr.mxu0 0.0
        %532 = vmatpush1.msra.mxu0 0.0
        %533 = vmatprep.subr.mxu0 0.0
        %534 = vmatpush1.msra.mxu0 0.0
        %535 = vmatprep.subr.mxu0 0.0
        %536 = vmatpush1.msra.mxu0 0.0
        %537 = vmatprep.subr.mxu0 0.0
        %538 = vmatpush1.msra.mxu0 0.0
        %539 = vmatprep.subr.mxu0 0.0
        %540 = vmatpush1.msra.mxu0 0.0
        %541 = vmatprep.subr.mxu0 0.0
        %542 = vmatpush1.msra.mxu0 0.0
        %543 = vmatprep.subr.mxu0 0.0
        %544 = vmatpush1.msra.mxu0 0.0
        %545 = vmatprep.subr.mxu0 0.0
        %546 = vmatpush1.msra.mxu0 0.0
        %547 = vmatprep.subr.mxu0 0.0
        %548 = vmatpush1.msra.mxu0 0.0
        %549 = vmatprep.subr.mxu0 0.0
        %550 = vmatpush1.msra.mxu0 0.0
        %551 = vmatprep.subr.mxu0 0.0
        %552 = vmatpush1.msra.mxu0 0.0
        %553 = vmatprep.subr.mxu0 0.0
        %554 = vmatpush1.msra.mxu0 0.0
        %555 = vmatprep.subr.mxu0 0.0
        %556 = vmatpush1.msra.mxu0 0.0
        %557 = vmatprep.subr.mxu0 0.0
        %558 = vmatpush1.msra.mxu0 0.0
        %559 = vmatprep.subr.mxu0 0.0
        %560 = vmatpush1.msra.mxu0 0.0
        %561 = vmatprep.subr.mxu0 0.0
        %562 = vmatpush1.msra.mxu0 0.0
        %563 = vmatprep.subr.mxu0 0.0
        %564 = vmatpush1.msra.mxu0 0.0
        %565 = vmatprep.mubr.f32.mxu0 0.0
        %566 = vmatmul.mubr.f32.gmra.mrb[0].mxu0 %v496
        %v567 = vpop.f32.mrb[0].mxu0
        %v568 = vadd.f32 0.0, %v567
        %v569 = vpop.f32.mrb[0].mxu0
        %570 = vdwg.mxu0
        %v571 = vadd.f32 %v492, %v568
        %572 = vst [vmem:[%s327] sm:$0xff] %v571
        %v573 = vld [vmem:[#allocation2] sm:$0xff]
        %v574 = vld [vmem:[#allocation2 + $0x8] sm:$0xff]
        %v575 = vld [vmem:[#allocation2 + $0x10] sm:$0xff]
        %576 = vst [vmem:[%s158] sm:$0xff] %v573
        %577 = vst [vmem:[%s158 + $0x8] sm:$0xff] %v574
        %578 = vst [vmem:[%s158 + $0x10] sm:$0xff] %v575
        %s579 = sand.u32 %s87, 1
        %s580 = scalar_lea.sflag [#allocation4], %s579
        %s581 = sand.u32 %s87, 1
        %s582 = smul.addr %s581, 24
        %s583 = scalar_lea.vmem [#allocation3], %s582
        // Predicated region
        $region29: #{tpu_custom_call.1} parent=27 // pred_check
          %p584 = pneg %p97
        $region30: #{tpu_custom_call.1} parent=27 // pred_check_branch
          %586 = sbr.rel (%p584) target = $region32
        $region31: #{tpu_custom_call.1} parent=27 // pred_region
          %s588 = ssub.s32 384, 384
          %589 = vsyncadd %s580, %s588
          %s590 = smul.addr %s20, 3
          %s591 = sadd.s32 %s21, %s590
          %s592 = smul.addr %s591, 128
          %s593 = scalar_lea.hbm %s2, %s592
          %s594 = sshll.u32 %s583, 4
          %s595 = int_to_ptr.vmem [resolvable:$true] %s594
          %600 = dma.vmem_to_hbm [thread:$0]  %s595, 384, %s593, %s580, 128, 128, 8
        $region32: #{tpu_custom_call.1} parent=27 // pred_fallthru
          _
      $region28: #{tpu_custom_call.1} parent=5 // pred_fallthru
        _
      %p601 = scmp.le.s32.totalorder 2, %s11
      // Predicated region
      $region33: #{tpu_custom_call.1} parent=5 // pred_check
        %p602 = pneg %p601
      $region34: #{tpu_custom_call.1} parent=5 // pred_check_branch
        %604 = sbr.rel (%p602) target = $region36
      $region35: #{tpu_custom_call.1} parent=5 // pred_region
        %s605 = ssub.s32 %s11, 2
        // Predicated region
        $region37: #{tpu_custom_call.1} parent=35 // pred_check
          %p606 = pneg %p103
        $region38: #{tpu_custom_call.1} parent=35 // pred_check_branch
          %608 = sbr.rel (%p606) target = $region40
        $region39: #{tpu_custom_call.1} parent=35 // pred_region
          %s609 = sand.u32 %s88, 1
          %s610 = scalar_lea.sflag [#allocation4], %s609
          %s611 = sand.u32 %s88, 1
          %s612 = smul.addr %s611, 24
          %s613 = scalar_lea.vmem [#allocation3], %s612
          %614 = dma.done %s610, 384
        $region40: #{tpu_custom_call.1} parent=35 // pred_fallthru
          _
      $region36: #{tpu_custom_call.1} parent=5 // pred_fallthru
        _
    $region6: #{tpu_custom_call.1} parent=1 // loop_footer
      %s15 = sadd.s32 1, %s11
    $region7: #{tpu_custom_call.1} parent=1 // loop_footer_branch
      %10 = sbr.rel target = $region3
    $region8: #{tpu_custom_call.1} parent=1 // loop_exit
      _
    %615 = vsyncpa [#allocation4], 1
    %s616 = scalar_lea.sflag [#allocation4], 1
    %617 = vsyncpa %s616, 1

</llo_original>
